<compile_context>
chip_gen: v7x
topology: tpu7x:2x2x1
jax: 0.10.0
libtpu: 0.0.40
codegen_flags: <defaults>
</compile_context>

<pallas_src>
import functools

import jax
import jax.numpy as jnp
from jax.experimental import pallas as pl
from jax.experimental.pallas import tpu as pltpu


HIDDEN = 64
NUM_CLASSES = 10
PADDED_CLASSES = 128            # lane-dense output width; classes live in lanes 0..9
IN_FEATURES = 1 * 28 * 28       # channels * width * height
NEG_INF = -1e30                 # b3 pad value: exp underflows to 0 inside log_softmax
TB_MAX = 1024                   # max batch tile (rows) per grid step


def _round_up(x, m):
    return ((x + m - 1) // m) * m


def mlp_logsoftmax_kernel(x_ref, w1_ref, b1_ref, w2_ref, b2_ref, w3_ref, b3_ref, o_ref):
    """Fused MLP forward + log_softmax for one batch tile.

    x_ref : (TB, 784)  bf16
    w1_ref: (784, 64)  bf16    b1_ref: (1, 64)   f32
    w2_ref: (64, 64)   bf16    b2_ref: (1, 64)   f32
    w3_ref: (64, 128)  bf16 (cols 10..127 zero)
    b3_ref: (1, 128)   f32  (cols 10..127 = -1e30)
    o_ref : (TB, 128)  f32  (cols 10..127 are ignored by the caller)
    """
    x = x_ref[...]

    # Linear(784, 64) + ReLU   (Dropout(0.1) == identity at inference)
    h1 = jnp.dot(x, w1_ref[...], preferred_element_type=jnp.float32) + b1_ref[...]
    h1 = jnp.maximum(h1, 0.0)

    # Linear(64, 64) + ReLU    (Dropout(0.1) == identity at inference)
    h2 = jnp.dot(h1.astype(w2_ref.dtype), w2_ref[...],
                 preferred_element_type=jnp.float32) + b2_ref[...]
    h2 = jnp.maximum(h2, 0.0)

    # Linear(64, 10) padded to 128 lanes; pad columns come out as -1e30.
    logits = jnp.dot(h2.astype(w3_ref.dtype), w3_ref[...],
                     preferred_element_type=jnp.float32) + b3_ref[...]

    # log_softmax over dim=1 (last dim), numerically stable.  The -1e30 pad columns
    # contribute exp(-huge) == 0 to the sum, so lanes 0..9 match a 10-class softmax.
    m = jnp.max(logits, axis=-1, keepdims=True)
    shifted = logits - m
    lse = jnp.log(jnp.sum(jnp.exp(shifted), axis=-1, keepdims=True))
    o_ref[...] = (shifted - lse).astype(o_ref.dtype)


@jax.jit
def lit_mnist_forward(x_nchw, params):
    """x_nchw: (B, 1, 28, 28) -> (B, 10) float32 log-probabilities."""
    w1, b1, w2, b2, w3, b3 = params
    B = x_nchw.shape[0]

    # Flatten (same row-major order as torch.nn.Flatten); bf16 input halves HBM traffic.
    x2d = x_nchw.reshape(B, -1).astype(jnp.bfloat16)

    # bf16 weights (f32 accumulate inside the kernel), f32 biases.
    w1b = w1.astype(jnp.bfloat16)
    w2b = w2.astype(jnp.bfloat16)
    w3p = jnp.zeros((HIDDEN, PADDED_CLASSES), jnp.bfloat16)
    w3p = w3p.at[:, :NUM_CLASSES].set(w3.astype(jnp.bfloat16))
    b3p = jnp.full((1, PADDED_CLASSES), NEG_INF, jnp.float32)
    b3p = b3p.at[:, :NUM_CLASSES].set(b3.astype(jnp.float32))
    b1f = b1.astype(jnp.float32).reshape(1, HIDDEN)
    b2f = b2.astype(jnp.float32).reshape(1, HIDDEN)

    # Batch tiling: TB rows per grid step (multiple of 8 for sublane alignment).
    tb = min(TB_MAX, _round_up(B, 8))
    b_pad = _round_up(B, tb)
    if b_pad != B:
        x2d = jnp.pad(x2d, ((0, b_pad - B), (0, 0)))
    grid = (b_pad // tb,)

    # VMEM budget: double-buffered x + out tiles, resident weights, in-kernel
    # intermediates (h1/h2/logits, <= ~2 MiB at tb=1024), plus generous slack.
    x_tile_bytes = tb * IN_FEATURES * 2           # bf16
    out_tile_bytes = tb * PADDED_CLASSES * 4      # f32
    weight_bytes = ((IN_FEATURES * HIDDEN + HIDDEN * HIDDEN + HIDDEN * PADDED_CLASSES) * 2
                    + (HIDDEN + HIDDEN + PADDED_CLASSES) * 4)
    vmem_limit_bytes = int(2 * x_tile_bytes + 2 * out_tile_bytes + weight_bytes
                           + (8 << 20))

    cost = pl.CostEstimate(
        flops=2 * b_pad * (IN_FEATURES * HIDDEN + HIDDEN * HIDDEN + HIDDEN * NUM_CLASSES),
        transcendentals=b_pad * PADDED_CLASSES,
        bytes_accessed=b_pad * IN_FEATURES * 2 + weight_bytes + b_pad * PADDED_CLASSES * 4,
    )

    out_padded = pl.pallas_call(
        mlp_logsoftmax_kernel,
        out_shape=jax.ShapeDtypeStruct((b_pad, PADDED_CLASSES), jnp.float32),
        grid=grid,
        in_specs=[
            pl.BlockSpec((tb, IN_FEATURES), lambda i: (i, 0)),          # x tile
            pl.BlockSpec((IN_FEATURES, HIDDEN), lambda i: (0, 0)),      # w1 (resident)
            pl.BlockSpec((1, HIDDEN), lambda i: (0, 0)),                # b1
            pl.BlockSpec((HIDDEN, HIDDEN), lambda i: (0, 0)),           # w2
            pl.BlockSpec((1, HIDDEN), lambda i: (0, 0)),                # b2
            pl.BlockSpec((HIDDEN, PADDED_CLASSES), lambda i: (0, 0)),   # w3 (padded)
            pl.BlockSpec((1, PADDED_CLASSES), lambda i: (0, 0)),        # b3 (padded)
        ],
        out_specs=pl.BlockSpec((tb, PADDED_CLASSES), lambda i: (i, 0)),
        compiler_params=pltpu.CompilerParams(
            dimension_semantics=("parallel",),       # v7x megacore; no-op on v5e/v6e
            vmem_limit_bytes=vmem_limit_bytes,
        ),
        cost_estimate=cost,
    )(x2d, w1b, b1f, w2b, b2f, w3p, b3p)

    return out_padded[:B, :NUM_CLASSES]


def init_params(key):
    """Deterministic init mimicking PyTorch Linear default (uniform +/- 1/sqrt(fan_in))."""
    def linear(k, fan_in, fan_out):
        kw, kb = jax.random.split(k)
        bound = 1.0 / jnp.sqrt(jnp.float32(fan_in))
        w = jax.random.uniform(kw, (fan_in, fan_out), jnp.float32, -bound, bound)
        b = jax.random.uniform(kb, (1, fan_out), jnp.float32, -bound, bound)
        return w, b

    k1, k2, k3 = jax.random.split(key, 3)
    w1, b1 = linear(k1, IN_FEATURES, HIDDEN)
    w2, b2 = linear(k2, HIDDEN, HIDDEN)
    w3, b3 = linear(k3, HIDDEN, NUM_CLASSES)
    return (w1, b1, w2, b2, w3, b3)


def reference_forward(x_nchw, params):
    """Pure-JAX f32 reference for correctness check."""
    w1, b1, w2, b2, w3, b3 = params
    x = x_nchw.reshape(x_nchw.shape[0], -1).astype(jnp.float32)
    h1 = jnp.maximum(x @ w1 + b1, 0.0)
    h2 = jnp.maximum(h1 @ w2 + b2, 0.0)
    logits = h2 @ w3 + b3
    return jax.nn.log_softmax(logits, axis=1)


if __name__ == "__main__":
    key = jax.random.PRNGKey(0)
    kx, kp = jax.random.split(key)
    params = init_params(kp)

    for B in (8, 5):  # 5 exercises the batch-padding path
        x = jax.random.normal(kx, (B, 1, 28, 28), jnp.float32)  # NCHW like PyTorch
        out = lit_mnist_forward(x, params)
        out = jax.block_until_ready(out)

        ref = reference_forward(x, params)
        assert out.shape == (B, NUM_CLASSES), out.shape
        # bf16 inputs/weights with f32 accumulate -> loosened tolerance vs f32 reference.
        assert jnp.allclose(out, ref, atol=3e-2, rtol=3e-2), "mismatch vs reference"
        # log-probabilities should (approximately) sum to 1 after exp.
        assert jnp.allclose(jnp.exp(out).sum(axis=1), 1.0, atol=1e-3)

    print("KERNEL_OK")
</pallas_src>

<mosaic_0001>
module attributes {stable_mosaic.version = 11 : i64} {
  func.func @mlp_logsoftmax_kernel(%arg0: i32, %arg1: memref<8x784xbf16, #tpu.memory_space<vmem>>, %arg2: memref<784x64xbf16, #tpu.memory_space<vmem>>, %arg3: memref<1x64xf32, #tpu.memory_space<vmem>>, %arg4: memref<64x64xbf16, #tpu.memory_space<vmem>>, %arg5: memref<1x64xf32, #tpu.memory_space<vmem>>, %arg6: memref<64x128xbf16, #tpu.memory_space<vmem>>, %arg7: memref<1x128xf32, #tpu.memory_space<vmem>>, %arg8: memref<8x128xf32, #tpu.memory_space<vmem>>) attributes {dimension_semantics = [#tpu.dimension_semantics<parallel>], iteration_bounds = array<i64: 1>, scalar_prefetch = 0 : i64, scratch_operands = 0 : i64, tpu.core_type = #tpu.core_type<tc>, window_params = [{transform_indices = @transform_0, window_bounds = array<i64: 8, 784>}, {pipeline_mode = #tpu.pipeline_mode<synchronous>, transform_indices = @transform_1, window_bounds = array<i64: 784, 64>}, {pipeline_mode = #tpu.pipeline_mode<synchronous>, transform_indices = @transform_2, window_bounds = array<i64: 1, 64>}, {pipeline_mode = #tpu.pipeline_mode<synchronous>, transform_indices = @transform_3, window_bounds = array<i64: 64, 64>}, {pipeline_mode = #tpu.pipeline_mode<synchronous>, transform_indices = @transform_4, window_bounds = array<i64: 1, 64>}, {pipeline_mode = #tpu.pipeline_mode<synchronous>, transform_indices = @transform_5, window_bounds = array<i64: 64, 128>}, {pipeline_mode = #tpu.pipeline_mode<synchronous>, transform_indices = @transform_6, window_bounds = array<i64: 1, 128>}, {transform_indices = @transform_7, window_bounds = array<i64: 8, 128>}]} {
    %c0 = arith.constant 0 : index
    %c0_0 = arith.constant 0 : index
    %0 = vector.load %arg1[%c0, %c0_0] : memref<8x784xbf16, #tpu.memory_space<vmem>>, vector<8x784xbf16>
    %c0_1 = arith.constant 0 : index
    %c0_2 = arith.constant 0 : index
    %1 = vector.load %arg2[%c0_1, %c0_2] : memref<784x64xbf16, #tpu.memory_space<vmem>>, vector<784x64xbf16>
    %cst = arith.constant dense<0.000000e+00> : vector<8x64xf32>
    %2 = tpu.matmul %0, %1, %cst {dimension_numbers = #tpu.dot_dimension_numbers<[1], [0], [0], [1], [0, 0, 1, 1], [], []>} : vector<8x784xbf16>, vector<784x64xbf16>, vector<8x64xf32> -> vector<8x64xf32>
    %c0_3 = arith.constant 0 : index
    %c0_4 = arith.constant 0 : index
    %3 = vector.load %arg3[%c0_3, %c0_4] : memref<1x64xf32, #tpu.memory_space<vmem>>, vector<1x64xf32>
    %4 = vector.broadcast %3 : vector<1x64xf32> to vector<8x64xf32>
    %5 = arith.addf %2, %4 : vector<8x64xf32>
    %cst_5 = arith.constant 0.000000e+00 : f32
    %6 = vector.broadcast %cst_5 : f32 to vector<8x64xf32>
    %7 = arith.maximumf %5, %6 : vector<8x64xf32>
    %8 = arith.truncf %7 : vector<8x64xf32> to vector<8x64xbf16>
    %c0_6 = arith.constant 0 : index
    %c0_7 = arith.constant 0 : index
    %9 = vector.load %arg4[%c0_6, %c0_7] : memref<64x64xbf16, #tpu.memory_space<vmem>>, vector<64x64xbf16>
    %cst_8 = arith.constant dense<0.000000e+00> : vector<8x64xf32>
    %10 = tpu.matmul %8, %9, %cst_8 {dimension_numbers = #tpu.dot_dimension_numbers<[1], [0], [0], [1], [0, 0, 1, 1], [], []>} : vector<8x64xbf16>, vector<64x64xbf16>, vector<8x64xf32> -> vector<8x64xf32>
    %c0_9 = arith.constant 0 : index
    %c0_10 = arith.constant 0 : index
    %11 = vector.load %arg5[%c0_9, %c0_10] : memref<1x64xf32, #tpu.memory_space<vmem>>, vector<1x64xf32>
    %12 = vector.broadcast %11 : vector<1x64xf32> to vector<8x64xf32>
    %13 = arith.addf %10, %12 : vector<8x64xf32>
    %cst_11 = arith.constant 0.000000e+00 : f32
    %14 = vector.broadcast %cst_11 : f32 to vector<8x64xf32>
    %15 = arith.maximumf %13, %14 : vector<8x64xf32>
    %16 = arith.truncf %15 : vector<8x64xf32> to vector<8x64xbf16>
    %c0_12 = arith.constant 0 : index
    %c0_13 = arith.constant 0 : index
    %17 = vector.load %arg6[%c0_12, %c0_13] : memref<64x128xbf16, #tpu.memory_space<vmem>>, vector<64x128xbf16>
    %cst_14 = arith.constant dense<0.000000e+00> : vector<8x128xf32>
    %18 = tpu.matmul %16, %17, %cst_14 {dimension_numbers = #tpu.dot_dimension_numbers<[1], [0], [0], [1], [0, 0, 1, 1], [], []>} : vector<8x64xbf16>, vector<64x128xbf16>, vector<8x128xf32> -> vector<8x128xf32>
    %c0_15 = arith.constant 0 : index
    %c0_16 = arith.constant 0 : index
    %19 = vector.load %arg7[%c0_15, %c0_16] : memref<1x128xf32, #tpu.memory_space<vmem>>, vector<1x128xf32>
    %20 = vector.broadcast %19 : vector<1x128xf32> to vector<8x128xf32>
    %21 = arith.addf %18, %20 : vector<8x128xf32>
    %cst_17 = arith.constant dense<0xFF800000> : vector<8xf32>
    %22 = vector.multi_reduction <maximumf>, %21, %cst_17 [1] : vector<8x128xf32> to vector<8xf32>
    %23 = vector.shape_cast %22 : vector<8xf32> to vector<8x1xf32>
    %24 = vector.broadcast %23 : vector<8x1xf32> to vector<8x128xf32>
    %25 = arith.subf %21, %24 : vector<8x128xf32>
    %26 = math.exp %25 : vector<8x128xf32>
    %cst_18 = arith.constant dense<0.000000e+00> : vector<8xf32>
    %27 = vector.multi_reduction <add>, %26, %cst_18 [1] : vector<8x128xf32> to vector<8xf32>
    %28 = vector.shape_cast %27 : vector<8xf32> to vector<8x1xf32>
    %29 = math.log %28 : vector<8x1xf32>
    %30 = vector.broadcast %29 : vector<8x1xf32> to vector<8x128xf32>
    %31 = arith.subf %25, %30 : vector<8x128xf32>
    %c0_19 = arith.constant 0 : index
    %c0_20 = arith.constant 0 : index
    %32 = vector.load %arg8[%c0_19, %c0_20] : memref<8x128xf32, #tpu.memory_space<vmem>>, vector<8x128xf32>
    tpu.vector_store %arg8[%c0_19, %c0_20], %31 {strides = array<i32>} : memref<8x128xf32, #tpu.memory_space<vmem>>, vector<8x128xf32>,
    return
  }
  func.func @transform_0(%arg0: i32) -> (i32, i32) {
    %c0_i32 = arith.constant 0 : i32
    %c0_i32_0 = arith.constant 0 : i32
    return %arg0, %c0_i32 : i32, i32
  }
  func.func @transform_1(%arg0: i32) -> (i32, i32) {
    %c0_i32 = arith.constant 0 : i32
    %c0_i32_0 = arith.constant 0 : i32
    %c0_i32_1 = arith.constant 0 : i32
    return %c0_i32, %c0_i32_0 : i32, i32
  }
  func.func @transform_2(%arg0: i32) -> (i32, i32) {
    %c0_i32 = arith.constant 0 : i32
    %c0_i32_0 = arith.constant 0 : i32
    %c0_i32_1 = arith.constant 0 : i32
    return %c0_i32, %c0_i32_0 : i32, i32
  }
  func.func @transform_3(%arg0: i32) -> (i32, i32) {
    %c0_i32 = arith.constant 0 : i32
    %c0_i32_0 = arith.constant 0 : i32
    %c0_i32_1 = arith.constant 0 : i32
    return %c0_i32, %c0_i32_0 : i32, i32
  }
  func.func @transform_4(%arg0: i32) -> (i32, i32) {
    %c0_i32 = arith.constant 0 : i32
    %c0_i32_0 = arith.constant 0 : i32
    %c0_i32_1 = arith.constant 0 : i32
    return %c0_i32, %c0_i32_0 : i32, i32
  }
  func.func @transform_5(%arg0: i32) -> (i32, i32) {
    %c0_i32 = arith.constant 0 : i32
    %c0_i32_0 = arith.constant 0 : i32
    %c0_i32_1 = arith.constant 0 : i32
    return %c0_i32, %c0_i32_0 : i32, i32
  }
  func.func @transform_6(%arg0: i32) -> (i32, i32) {
    %c0_i32 = arith.constant 0 : i32
    %c0_i32_0 = arith.constant 0 : i32
    %c0_i32_1 = arith.constant 0 : i32
    return %c0_i32, %c0_i32_0 : i32, i32
  }
  func.func @transform_7(%arg0: i32) -> (i32, i32) {
    %c0_i32 = arith.constant 0 : i32
    %c0_i32_0 = arith.constant 0 : i32
    return %arg0, %c0_i32 : i32, i32
  }
}

</mosaic_0001>

<llo_original>
// kernel: lit_mnist_forward.1
$region0: #{lit_mnist_forward.1}
  #allocation0 [shape = 'u32[]', space=smem, size = 0x4, offset = 0x4, fixed_abs, tag = 'smem constant byte address 0x4 - core index']
  #allocation1 [shape = 'u32[144,128]{1,0:T(1,128)}', space=vmem, size = 0x12000, scoped, tag = 'internal scratch']
  %s0 = inlined_call_operand.vmem [shape: bf16[8,784], index: 0, kind: input, shape index: {}]
  %s1 = inlined_call_operand.vmem [shape: bf16[784,64], index: 1, kind: input, shape index: {}]
  %s2 = inlined_call_operand.vmem [shape: f32[1,64], index: 2, kind: input, shape index: {}]
  %s3 = inlined_call_operand.vmem [shape: bf16[64,64], index: 3, kind: input, shape index: {}]
  %s4 = inlined_call_operand.vmem [shape: f32[1,64], index: 4, kind: input, shape index: {}]
  %s5 = inlined_call_operand.vmem [shape: bf16[64,128], index: 5, kind: input, shape index: {}]
  %s6 = inlined_call_operand.vmem [shape: f32[1,128], index: 6, kind: input, shape index: {}]
  %s7 = inlined_call_operand.hbm [shape: f32[8,128], index: 7, kind: output, shape index: {}]
  %s8 = sld [smem:[#allocation0]]
  $region38: #{lit_mnist_forward.1} parent=0
    _
  %s10 = ssub.s32 1, %s8
  %s11 = scalar_select 0, %s10, %s8
  $region1: #{lit_mnist_forward.1} parent=0
    #allocation2 [shape = 'u8[4096]{0}', space=vmem, size = 0x1000, scoped, tag = 'output window, operand 0, single buffered']
    #allocation3 [shape = 's32[1]{0}', space=sflag, size = 0x4, scoped, tag = 'scoped memory for lit_mnist_forward.1']
    %12 = vsyncpa [#allocation3], 0
    // Predicated region
    $region2: #{lit_mnist_forward.1} parent=1 // pred_check
      _
    $region3: #{lit_mnist_forward.1} parent=1 // pred_check_branch
      %14 = sbr.rel (0) target = $region5
    $region4: #{lit_mnist_forward.1} parent=1 // pred_region
      _
    $region5: #{lit_mnist_forward.1} parent=1 // pred_fallthru
      _
    // Predicated region
    $region6: #{lit_mnist_forward.1} parent=1 // pred_check
      _
    $region7: #{lit_mnist_forward.1} parent=1 // pred_check_branch
      %16 = sbr.rel (0) target = $region9
    $region8: #{lit_mnist_forward.1} parent=1 // pred_region
      _
    $region9: #{lit_mnist_forward.1} parent=1 // pred_fallthru
      _
    // Predicated region
    $region10: #{lit_mnist_forward.1} parent=1 // pred_check
      _
    $region11: #{lit_mnist_forward.1} parent=1 // pred_check_branch
      %18 = sbr.rel (0) target = $region13
    $region12: #{lit_mnist_forward.1} parent=1 // pred_region
      _
    $region13: #{lit_mnist_forward.1} parent=1 // pred_fallthru
      _
    // Predicated region
    $region14: #{lit_mnist_forward.1} parent=1 // pred_check
      _
    $region15: #{lit_mnist_forward.1} parent=1 // pred_check_branch
      %20 = sbr.rel (0) target = $region17
    $region16: #{lit_mnist_forward.1} parent=1 // pred_region
      _
    $region17: #{lit_mnist_forward.1} parent=1 // pred_fallthru
      _
    // Predicated region
    $region18: #{lit_mnist_forward.1} parent=1 // pred_check
      _
    $region19: #{lit_mnist_forward.1} parent=1 // pred_check_branch
      %22 = sbr.rel (0) target = $region21
    $region20: #{lit_mnist_forward.1} parent=1 // pred_region
      _
    $region21: #{lit_mnist_forward.1} parent=1 // pred_fallthru
      _
    // Predicated region
    $region22: #{lit_mnist_forward.1} parent=1 // pred_check
      _
    $region23: #{lit_mnist_forward.1} parent=1 // pred_check_branch
      %24 = sbr.rel (0) target = $region25
    $region24: #{lit_mnist_forward.1} parent=1 // pred_region
      _
    $region25: #{lit_mnist_forward.1} parent=1 // pred_fallthru
      _
    // Predicated region
    $region26: #{lit_mnist_forward.1} parent=1 // pred_check
      _
    $region27: #{lit_mnist_forward.1} parent=1 // pred_check_branch
      %26 = sbr.rel (0) target = $region29
    $region28: #{lit_mnist_forward.1} parent=1 // pred_region
      _
    $region29: #{lit_mnist_forward.1} parent=1 // pred_fallthru
      _
    %v28 = vld [vmem:[%s0] sm:$0xff]
    %v29 = vld [vmem:[%s0 + $0x8] sm:$0xff]
    %v30 = vld [vmem:[%s0 + $0x10] sm:$0xff]
    %v31 = vld [vmem:[%s0 + $0x18] sm:$0xf]
    %v32 = vld [vmem:[%s1] sm:$0xf]
    %v33 = vld [vmem:[%s1 + $0x4] sm:$0xf]
    %v34 = vld [vmem:[%s1 + $0x8] sm:$0xf]
    %v35 = vld [vmem:[%s1 + $0xc] sm:$0xf]
    %v36 = vld [vmem:[%s1 + $0x10] sm:$0xf]
    %v37 = vld [vmem:[%s1 + $0x14] sm:$0xf]
    %v38 = vld [vmem:[%s1 + $0x18] sm:$0xf]
    %v39 = vld [vmem:[%s1 + $0x1c] sm:$0xf]
    %v40 = vld [vmem:[%s1 + $0x20] sm:$0xf]
    %v41 = vld [vmem:[%s1 + $0x24] sm:$0xf]
    %v42 = vld [vmem:[%s1 + $0x28] sm:$0xf]
    %v43 = vld [vmem:[%s1 + $0x2c] sm:$0xf]
    %v44 = vld [vmem:[%s1 + $0x30] sm:$0xf]
    %v45 = vld [vmem:[%s1 + $0x34] sm:$0xf]
    %v46 = vld [vmem:[%s1 + $0x38] sm:$0xf]
    %v47 = vld [vmem:[%s1 + $0x3c] sm:$0xf]
    %v48 = vld [vmem:[%s1 + $0x40] sm:$0xf]
    %v49 = vld [vmem:[%s1 + $0x44] sm:$0xf]
    %v50 = vld [vmem:[%s1 + $0x48] sm:$0xf]
    %v51 = vld [vmem:[%s1 + $0x4c] sm:$0xf]
    %v52 = vld [vmem:[%s1 + $0x50] sm:$0xf]
    %v53 = vld [vmem:[%s1 + $0x54] sm:$0xf]
    %v54 = vld [vmem:[%s1 + $0x58] sm:$0xf]
    %v55 = vld [vmem:[%s1 + $0x5c] sm:$0xf]
    %v56 = vld [vmem:[%s1 + $0x60] sm:$0xf]
    %v57 = vld [vmem:[%s1 + $0x64] sm:$0xf]
    %v58 = vld [vmem:[%s1 + $0x68] sm:$0xf]
    %v59 = vld [vmem:[%s1 + $0x6c] sm:$0xf]
    %v60 = vld [vmem:[%s1 + $0x70] sm:$0xf]
    %v61 = vld [vmem:[%s1 + $0x74] sm:$0xf]
    %v62 = vld [vmem:[%s1 + $0x78] sm:$0xf]
    %v63 = vld [vmem:[%s1 + $0x7c] sm:$0xf]
    %v64 = vld [vmem:[%s1 + $0x80] sm:$0xf]
    %v65 = vld [vmem:[%s1 + $0x84] sm:$0xf]
    %v66 = vld [vmem:[%s1 + $0x88] sm:$0xf]
    %v67 = vld [vmem:[%s1 + $0x8c] sm:$0xf]
    %v68 = vld [vmem:[%s1 + $0x90] sm:$0xf]
    %v69 = vld [vmem:[%s1 + $0x94] sm:$0xf]
    %v70 = vld [vmem:[%s1 + $0x98] sm:$0xf]
    %v71 = vld [vmem:[%s1 + $0x9c] sm:$0xf]
    %v72 = vld [vmem:[%s1 + $0xa0] sm:$0xf]
    %v73 = vld [vmem:[%s1 + $0xa4] sm:$0xf]
    %v74 = vld [vmem:[%s1 + $0xa8] sm:$0xf]
    %v75 = vld [vmem:[%s1 + $0xac] sm:$0xf]
    %v76 = vld [vmem:[%s1 + $0xb0] sm:$0xf]
    %v77 = vld [vmem:[%s1 + $0xb4] sm:$0xf]
    %v78 = vld [vmem:[%s1 + $0xb8] sm:$0xf]
    %v79 = vld [vmem:[%s1 + $0xbc] sm:$0xf]
    %v80 = vld [vmem:[%s1 + $0xc0] sm:$0xf]
    %v81 = vld [vmem:[%s1 + $0xc4] sm:$0xf]
    %v82 = vld [vmem:[%s1 + $0xc8] sm:$0xf]
    %v83 = vld [vmem:[%s1 + $0xcc] sm:$0xf]
    %v84 = vld [vmem:[%s1 + $0xd0] sm:$0xf]
    %v85 = vld [vmem:[%s1 + $0xd4] sm:$0xf]
    %v86 = vld [vmem:[%s1 + $0xd8] sm:$0xf]
    %v87 = vld [vmem:[%s1 + $0xdc] sm:$0xf]
    %v88 = vld [vmem:[%s1 + $0xe0] sm:$0xf]
    %v89 = vld [vmem:[%s1 + $0xe4] sm:$0xf]
    %v90 = vld [vmem:[%s1 + $0xe8] sm:$0xf]
    %v91 = vld [vmem:[%s1 + $0xec] sm:$0xf]
    %v92 = vld [vmem:[%s1 + $0xf0] sm:$0xf]
    %v93 = vld [vmem:[%s1 + $0xf4] sm:$0xf]
    %v94 = vld [vmem:[%s1 + $0xf8] sm:$0xf]
    %v95 = vld [vmem:[%s1 + $0xfc] sm:$0xf]
    %v96 = vld [vmem:[%s1 + $0x100] sm:$0xf]
    %v97 = vld [vmem:[%s1 + $0x104] sm:$0xf]
    %v98 = vld [vmem:[%s1 + $0x108] sm:$0xf]
    %v99 = vld [vmem:[%s1 + $0x10c] sm:$0xf]
    %v100 = vld [vmem:[%s1 + $0x110] sm:$0xf]
    %v101 = vld [vmem:[%s1 + $0x114] sm:$0xf]
    %v102 = vld [vmem:[%s1 + $0x118] sm:$0xf]
    %v103 = vld [vmem:[%s1 + $0x11c] sm:$0xf]
    %v104 = vld [vmem:[%s1 + $0x120] sm:$0xf]
    %v105 = vld [vmem:[%s1 + $0x124] sm:$0xf]
    %v106 = vld [vmem:[%s1 + $0x128] sm:$0xf]
    %v107 = vld [vmem:[%s1 + $0x12c] sm:$0xf]
    %v108 = vld [vmem:[%s1 + $0x130] sm:$0xf]
    %v109 = vld [vmem:[%s1 + $0x134] sm:$0xf]
    %v110 = vld [vmem:[%s1 + $0x138] sm:$0xf]
    %v111 = vld [vmem:[%s1 + $0x13c] sm:$0xf]
    %v112 = vld [vmem:[%s1 + $0x140] sm:$0xf]
    %v113 = vld [vmem:[%s1 + $0x144] sm:$0xf]
    %v114 = vld [vmem:[%s1 + $0x148] sm:$0xf]
    %v115 = vld [vmem:[%s1 + $0x14c] sm:$0xf]
    %v116 = vld [vmem:[%s1 + $0x150] sm:$0xf]
    %v117 = vld [vmem:[%s1 + $0x154] sm:$0xf]
    %v118 = vld [vmem:[%s1 + $0x158] sm:$0xf]
    %v119 = vld [vmem:[%s1 + $0x15c] sm:$0xf]
    %v120 = vld [vmem:[%s1 + $0x160] sm:$0xf]
    %v121 = vld [vmem:[%s1 + $0x164] sm:$0xf]
    %v122 = vld [vmem:[%s1 + $0x168] sm:$0xf]
    %v123 = vld [vmem:[%s1 + $0x16c] sm:$0xf]
    %v124 = vld [vmem:[%s1 + $0x170] sm:$0xf]
    %v125 = vld [vmem:[%s1 + $0x174] sm:$0xf]
    %v126 = vld [vmem:[%s1 + $0x178] sm:$0xf]
    %v127 = vld [vmem:[%s1 + $0x17c] sm:$0xf]
    %v128 = vld [vmem:[%s1 + $0x180] sm:$0xf]
    %v129 = vld [vmem:[%s1 + $0x184] sm:$0xf]
    %v130 = vld [vmem:[%s2] sm:$0x1]
    %v132 = vlaneseq
    %v133 = vshrl.u32 %v132, 7
    %v134 = vsub.s32 0, %v133
    %v135 = vrot.slane %v130, %v134
    %v141 = vunpack.c.l.b16 %v28
    %v142 = vunpack.c.h.b16 %v28
    %v143 = vunpack.c.l.b16 %v29
    %v144 = vunpack.c.h.b16 %v29
    %v145 = vunpack.c.l.b16 %v30
    %v146 = vunpack.c.h.b16 %v30
    %v147 = vunpack.c.l.b16 %v31
    %v148 = vpack.c.b16 %v141, %v141
    %v149 = vpack.c.b16 %v142, %v142
    %v150 = vpack.c.b16 %v143, %v143
    %v151 = vpack.c.b16 %v144, %v144
    %v152 = vpack.c.b16 %v145, %v145
    %v153 = vpack.c.b16 %v146, %v146
    %v154 = vpack.c.b16 %v147, %v147
    %v259 = vunpack.c.l.b16 %v32
    %v260 = vunpack.c.l.b16 %v33
    %v261 = vunpack.c.l.b16 %v34
    %v262 = vunpack.c.l.b16 %v35
    %v263 = vunpack.c.l.b16 %v36
    %v264 = vunpack.c.l.b16 %v37
    %v265 = vunpack.c.l.b16 %v38
    %v266 = vunpack.c.l.b16 %v39
    %v267 = vunpack.c.l.b16 %v40
    %v268 = vunpack.c.l.b16 %v41
    %v269 = vunpack.c.l.b16 %v42
    %v270 = vunpack.c.l.b16 %v43
    %v271 = vunpack.c.l.b16 %v44
    %v272 = vunpack.c.l.b16 %v45
    %v273 = vunpack.c.l.b16 %v46
    %v274 = vunpack.c.l.b16 %v47
    %v275 = vunpack.c.l.b16 %v48
    %v276 = vunpack.c.l.b16 %v49
    %v277 = vunpack.c.l.b16 %v50
    %v278 = vunpack.c.l.b16 %v51
    %v279 = vunpack.c.l.b16 %v52
    %v280 = vunpack.c.l.b16 %v53
    %v281 = vunpack.c.l.b16 %v54
    %v282 = vunpack.c.l.b16 %v55
    %v283 = vunpack.c.l.b16 %v56
    %v284 = vunpack.c.l.b16 %v57
    %v285 = vunpack.c.l.b16 %v58
    %v286 = vunpack.c.l.b16 %v59
    %v287 = vunpack.c.l.b16 %v60
    %v288 = vunpack.c.l.b16 %v61
    %v289 = vunpack.c.l.b16 %v62
    %v290 = vunpack.c.l.b16 %v63
    %v291 = vunpack.c.l.b16 %v64
    %v292 = vunpack.c.l.b16 %v65
    %v293 = vunpack.c.l.b16 %v66
    %v294 = vunpack.c.l.b16 %v67
    %v295 = vunpack.c.l.b16 %v68
    %v296 = vunpack.c.l.b16 %v69
    %v297 = vunpack.c.l.b16 %v70
    %v298 = vunpack.c.l.b16 %v71
    %v299 = vunpack.c.l.b16 %v72
    %v300 = vunpack.c.l.b16 %v73
    %v301 = vunpack.c.l.b16 %v74
    %v302 = vunpack.c.l.b16 %v75
    %v303 = vunpack.c.l.b16 %v76
    %v304 = vunpack.c.l.b16 %v77
    %v305 = vunpack.c.l.b16 %v78
    %v306 = vunpack.c.l.b16 %v79
    %v307 = vunpack.c.l.b16 %v80
    %v308 = vunpack.c.l.b16 %v81
    %v309 = vunpack.c.l.b16 %v82
    %v310 = vunpack.c.l.b16 %v83
    %v311 = vunpack.c.l.b16 %v84
    %v312 = vunpack.c.l.b16 %v85
    %v313 = vunpack.c.l.b16 %v86
    %v314 = vunpack.c.l.b16 %v87
    %v315 = vunpack.c.l.b16 %v88
    %v316 = vunpack.c.l.b16 %v89
    %v317 = vunpack.c.l.b16 %v90
    %v318 = vunpack.c.l.b16 %v91
    %v319 = vunpack.c.l.b16 %v92
    %v320 = vunpack.c.l.b16 %v93
    %v321 = vunpack.c.l.b16 %v94
    %v322 = vunpack.c.l.b16 %v95
    %v323 = vunpack.c.l.b16 %v96
    %v324 = vunpack.c.l.b16 %v97
    %v325 = vunpack.c.l.b16 %v98
    %v326 = vunpack.c.l.b16 %v99
    %v327 = vunpack.c.l.b16 %v100
    %v328 = vunpack.c.l.b16 %v101
    %v329 = vunpack.c.l.b16 %v102
    %v330 = vunpack.c.l.b16 %v103
    %v331 = vunpack.c.l.b16 %v104
    %v332 = vunpack.c.l.b16 %v105
    %v333 = vunpack.c.l.b16 %v106
    %v334 = vunpack.c.l.b16 %v107
    %v335 = vunpack.c.l.b16 %v108
    %v336 = vunpack.c.l.b16 %v109
    %v337 = vunpack.c.l.b16 %v110
    %v338 = vunpack.c.l.b16 %v111
    %v339 = vunpack.c.l.b16 %v112
    %v340 = vunpack.c.l.b16 %v113
    %v341 = vunpack.c.l.b16 %v114
    %v342 = vunpack.c.l.b16 %v115
    %v343 = vunpack.c.l.b16 %v116
    %v344 = vunpack.c.l.b16 %v117
    %v345 = vunpack.c.l.b16 %v118
    %v346 = vunpack.c.l.b16 %v119
    %v347 = vunpack.c.l.b16 %v120
    %v348 = vunpack.c.l.b16 %v121
    %v349 = vunpack.c.l.b16 %v122
    %v350 = vunpack.c.l.b16 %v123
    %v351 = vunpack.c.l.b16 %v124
    %v352 = vunpack.c.l.b16 %v125
    %v353 = vunpack.c.l.b16 %v126
    %v354 = vunpack.c.l.b16 %v127
    %v355 = vunpack.c.l.b16 %v128
    %v356 = vunpack.c.l.b16 %v129
    %v357 = vpack.c.b16 %v260, %v259
    %v358 = vpack.c.b16 %v262, %v261
    %v359 = vpack.c.b16 %v264, %v263
    %v360 = vpack.c.b16 %v266, %v265
    %v361 = vpack.c.b16 %v268, %v267
    %v362 = vpack.c.b16 %v270, %v269
    %v363 = vpack.c.b16 %v272, %v271
    %v364 = vpack.c.b16 %v274, %v273
    %v365 = vpack.c.b16 %v276, %v275
    %v366 = vpack.c.b16 %v278, %v277
    %v367 = vpack.c.b16 %v280, %v279
    %v368 = vpack.c.b16 %v282, %v281
    %v369 = vpack.c.b16 %v284, %v283
    %v370 = vpack.c.b16 %v286, %v285
    %v371 = vpack.c.b16 %v288, %v287
    %v372 = vpack.c.b16 %v290, %v289
    %v373 = vpack.c.b16 %v292, %v291
    %v374 = vpack.c.b16 %v294, %v293
    %v375 = vpack.c.b16 %v296, %v295
    %v376 = vpack.c.b16 %v298, %v297
    %v377 = vpack.c.b16 %v300, %v299
    %v378 = vpack.c.b16 %v302, %v301
    %v379 = vpack.c.b16 %v304, %v303
    %v380 = vpack.c.b16 %v306, %v305
    %v381 = vpack.c.b16 %v308, %v307
    %v382 = vpack.c.b16 %v310, %v309
    %v383 = vpack.c.b16 %v312, %v311
    %v384 = vpack.c.b16 %v314, %v313
    %v385 = vpack.c.b16 %v316, %v315
    %v386 = vpack.c.b16 %v318, %v317
    %v387 = vpack.c.b16 %v320, %v319
    %v388 = vpack.c.b16 %v322, %v321
    %v389 = vpack.c.b16 %v324, %v323
    %v390 = vpack.c.b16 %v326, %v325
    %v391 = vpack.c.b16 %v328, %v327
    %v392 = vpack.c.b16 %v330, %v329
    %v393 = vpack.c.b16 %v332, %v331
    %v394 = vpack.c.b16 %v334, %v333
    %v395 = vpack.c.b16 %v336, %v335
    %v396 = vpack.c.b16 %v338, %v337
    %v397 = vpack.c.b16 %v340, %v339
    %v398 = vpack.c.b16 %v342, %v341
    %v399 = vpack.c.b16 %v344, %v343
    %v400 = vpack.c.b16 %v346, %v345
    %v401 = vpack.c.b16 %v348, %v347
    %v402 = vpack.c.b16 %v350, %v349
    %v403 = vpack.c.b16 %v352, %v351
    %v404 = vpack.c.b16 %v354, %v353
    %v405 = vpack.c.b16 %v356, %v355
    %vm455 = vcmask 130048
    %v457 = vsel %vm455, %v154, 0
    %459 = vmatprep.subr.bf16.mxu0 0
    %460 = vmatpush1.bf16.msra.mxu0 %v357
    %461 = vmatprep.subr.bf16.mxu0 0
    %462 = vmatpush1.bf16.msra.mxu0 %v358
    %463 = vmatprep.subr.bf16.mxu0 0
    %464 = vmatpush1.bf16.msra.mxu0 %v359
    %465 = vmatprep.subr.bf16.mxu0 0
    %466 = vmatpush1.bf16.msra.mxu0 %v360
    %467 = vmatprep.subr.bf16.mxu0 0
    %468 = vmatpush1.bf16.msra.mxu0 %v361
    %469 = vmatprep.subr.bf16.mxu0 0
    %470 = vmatpush1.bf16.msra.mxu0 %v362
    %471 = vmatprep.subr.bf16.mxu0 0
    %472 = vmatpush1.bf16.msra.mxu0 %v363
    %473 = vmatprep.subr.bf16.mxu0 0
    %474 = vmatpush1.bf16.msra.mxu0 %v364
    %475 = vmatprep.subr.bf16.mxu0 0
    %476 = vmatpush1.bf16.msra.mxu0 %v365
    %477 = vmatprep.subr.bf16.mxu0 0
    %478 = vmatpush1.bf16.msra.mxu0 %v366
    %479 = vmatprep.subr.bf16.mxu0 0
    %480 = vmatpush1.bf16.msra.mxu0 %v367
    %481 = vmatprep.subr.bf16.mxu0 0
    %482 = vmatpush1.bf16.msra.mxu0 %v368
    %483 = vmatprep.subr.bf16.mxu0 0
    %484 = vmatpush1.bf16.msra.mxu0 %v369
    %485 = vmatprep.subr.bf16.mxu0 0
    %486 = vmatpush1.bf16.msra.mxu0 %v370
    %487 = vmatprep.subr.bf16.mxu0 0
    %488 = vmatpush1.bf16.msra.mxu0 %v371
    %489 = vmatprep.subr.bf16.mxu0 0
    %490 = vmatpush1.bf16.msra.mxu0 %v372
    %491 = vmatprep.mubr.bf16.mxu0 %v149
    %492 = vmatmul.mubr.bf16.gmra.mrb[0].mxu0 %v148
    %v493 = vpop.f32.mrb[0].mxu0
    %v494 = vadd.f32 %v135, %v493
    %v495 = vpop.f32.mrb[0].mxu0
    %v496 = vpop.f32.mrb[0].mxu0
    %v497 = vpop.f32.mrb[0].mxu0
    %498 = vdwg.mxu0
    %499 = vmatprep.subr.bf16.mxu0 0
    %500 = vmatpush1.bf16.msra.mxu0 %v373
    %501 = vmatprep.subr.bf16.mxu0 0
    %502 = vmatpush1.bf16.msra.mxu0 %v374
    %503 = vmatprep.subr.bf16.mxu0 0
    %504 = vmatpush1.bf16.msra.mxu0 %v375
    %505 = vmatprep.subr.bf16.mxu0 0
    %506 = vmatpush1.bf16.msra.mxu0 %v376
    %507 = vmatprep.subr.bf16.mxu0 0
    %508 = vmatpush1.bf16.msra.mxu0 %v377
    %509 = vmatprep.subr.bf16.mxu0 0
    %510 = vmatpush1.bf16.msra.mxu0 %v378
    %511 = vmatprep.subr.bf16.mxu0 0
    %512 = vmatpush1.bf16.msra.mxu0 %v379
    %513 = vmatprep.subr.bf16.mxu0 0
    %514 = vmatpush1.bf16.msra.mxu0 %v380
    %515 = vmatprep.subr.bf16.mxu0 0
    %516 = vmatpush1.bf16.msra.mxu0 %v381
    %517 = vmatprep.subr.bf16.mxu0 0
    %518 = vmatpush1.bf16.msra.mxu0 %v382
    %519 = vmatprep.subr.bf16.mxu0 0
    %520 = vmatpush1.bf16.msra.mxu0 %v383
    %521 = vmatprep.subr.bf16.mxu0 0
    %522 = vmatpush1.bf16.msra.mxu0 %v384
    %523 = vmatprep.subr.bf16.mxu0 0
    %524 = vmatpush1.bf16.msra.mxu0 %v385
    %525 = vmatprep.subr.bf16.mxu0 0
    %526 = vmatpush1.bf16.msra.mxu0 %v386
    %527 = vmatprep.subr.bf16.mxu0 0
    %528 = vmatpush1.bf16.msra.mxu0 %v387
    %529 = vmatprep.subr.bf16.mxu0 0
    %530 = vmatpush1.bf16.msra.mxu0 %v388
    %531 = vmatprep.mubr.bf16.mxu0 %v151
    %532 = vmatmul.mubr.bf16.gmra.mrb[0].mxu0 %v150
    %v533 = vpop.f32.mrb[0].mxu0
    %v534 = vadd.f32 %v494, %v533
    %v535 = vpop.f32.mrb[0].mxu0
    %v536 = vpop.f32.mrb[0].mxu0
    %v537 = vpop.f32.mrb[0].mxu0
    %538 = vdwg.mxu0
    %539 = vmatprep.subr.bf16.mxu0 0
    %540 = vmatpush1.bf16.msra.mxu0 %v389
    %541 = vmatprep.subr.bf16.mxu0 0
    %542 = vmatpush1.bf16.msra.mxu0 %v390
    %543 = vmatprep.subr.bf16.mxu0 0
    %544 = vmatpush1.bf16.msra.mxu0 %v391
    %545 = vmatprep.subr.bf16.mxu0 0
    %546 = vmatpush1.bf16.msra.mxu0 %v392
    %547 = vmatprep.subr.bf16.mxu0 0
    %548 = vmatpush1.bf16.msra.mxu0 %v393
    %549 = vmatprep.subr.bf16.mxu0 0
    %550 = vmatpush1.bf16.msra.mxu0 %v394
    %551 = vmatprep.subr.bf16.mxu0 0
    %552 = vmatpush1.bf16.msra.mxu0 %v395
    %553 = vmatprep.subr.bf16.mxu0 0
    %554 = vmatpush1.bf16.msra.mxu0 %v396
    %555 = vmatprep.subr.bf16.mxu0 0
    %556 = vmatpush1.bf16.msra.mxu0 %v397
    %557 = vmatprep.subr.bf16.mxu0 0
    %558 = vmatpush1.bf16.msra.mxu0 %v398
    %559 = vmatprep.subr.bf16.mxu0 0
    %560 = vmatpush1.bf16.msra.mxu0 %v399
    %561 = vmatprep.subr.bf16.mxu0 0
    %562 = vmatpush1.bf16.msra.mxu0 %v400
    %563 = vmatprep.subr.bf16.mxu0 0
    %564 = vmatpush1.bf16.msra.mxu0 %v401
    %565 = vmatprep.subr.bf16.mxu0 0
    %566 = vmatpush1.bf16.msra.mxu0 %v402
    %567 = vmatprep.subr.bf16.mxu0 0
    %568 = vmatpush1.bf16.msra.mxu0 %v403
    %569 = vmatprep.subr.bf16.mxu0 0
    %570 = vmatpush1.bf16.msra.mxu0 %v404
    %571 = vmatprep.mubr.bf16.mxu0 %v153
    %572 = vmatmul.mubr.bf16.gmra.mrb[0].mxu0 %v152
    %v573 = vpop.f32.mrb[0].mxu0
    %v574 = vadd.f32 %v534, %v573
    %v575 = vpop.f32.mrb[0].mxu0
    %v576 = vpop.f32.mrb[0].mxu0
    %v577 = vpop.f32.mrb[0].mxu0
    %578 = vdwg.mxu0
    %579 = vmatprep.subr.bf16.mxu0 0
    %580 = vmatpush1.bf16.msra.mxu0 %v405
    %581 = vmatprep.subr.bf16.mxu0 0
    %582 = vmatpush1.bf16.msra.mxu0 0
    %583 = vmatprep.subr.bf16.mxu0 0
    %584 = vmatpush1.bf16.msra.mxu0 0
    %585 = vmatprep.subr.bf16.mxu0 0
    %586 = vmatpush1.bf16.msra.mxu0 0
    %587 = vmatprep.subr.bf16.mxu0 0
    %588 = vmatpush1.bf16.msra.mxu0 0
    %589 = vmatprep.subr.bf16.mxu0 0
    %590 = vmatpush1.bf16.msra.mxu0 0
    %591 = vmatprep.subr.bf16.mxu0 0
    %592 = vmatpush1.bf16.msra.mxu0 0
    %593 = vmatprep.subr.bf16.mxu0 0
    %594 = vmatpush1.bf16.msra.mxu0 0
    %595 = vmatprep.subr.bf16.mxu0 0
    %596 = vmatpush1.bf16.msra.mxu0 0
    %597 = vmatprep.subr.bf16.mxu0 0
    %598 = vmatpush1.bf16.msra.mxu0 0
    %599 = vmatprep.subr.bf16.mxu0 0
    %600 = vmatpush1.bf16.msra.mxu0 0
    %601 = vmatprep.subr.bf16.mxu0 0
    %602 = vmatpush1.bf16.msra.mxu0 0
    %603 = vmatprep.subr.bf16.mxu0 0
    %604 = vmatpush1.bf16.msra.mxu0 0
    %605 = vmatprep.subr.bf16.mxu0 0
    %606 = vmatpush1.bf16.msra.mxu0 0
    %607 = vmatprep.subr.bf16.mxu0 0
    %608 = vmatpush1.bf16.msra.mxu0 0
    %609 = vmatprep.subr.bf16.mxu0 0
    %610 = vmatpush1.bf16.msra.mxu0 0
    %611 = vmatprep.mubr.bf16.mxu0 0
    %612 = vmatmul.mubr.bf16.gmra.mrb[0].mxu0 %v457
    %v613 = vpop.f32.mrb[0].mxu0
    %v614 = vadd.f32 %v574, %v613
    %v615 = vpop.f32.mrb[0].mxu0
    %v616 = vpop.f32.mrb[0].mxu0
    %v617 = vpop.f32.mrb[0].mxu0
    %618 = vdwg.mxu0
    %v619 = vmax.f32 %v614, 0.0
    %v620 = vpack.c.bf16 %v619, %v619
    %v621 = vld [vmem:[%s3] sm:$0xf]
    %v622 = vld [vmem:[%s3 + $0x4] sm:$0xf]
    %v623 = vld [vmem:[%s3 + $0x8] sm:$0xf]
    %v624 = vld [vmem:[%s3 + $0xc] sm:$0xf]
    %v625 = vld [vmem:[%s3 + $0x10] sm:$0xf]
    %v626 = vld [vmem:[%s3 + $0x14] sm:$0xf]
    %v627 = vld [vmem:[%s3 + $0x18] sm:$0xf]
    %v628 = vld [vmem:[%s3 + $0x1c] sm:$0xf]
    %v629 = vld [vmem:[%s4] sm:$0x1]
    %v631 = vlaneseq
    %v632 = vshrl.u32 %v631, 7
    %v633 = vsub.s32 0, %v632
    %v634 = vrot.slane %v629, %v633
    %v644 = vunpack.c.l.b16 %v621
    %v645 = vunpack.c.l.b16 %v622
    %v646 = vunpack.c.l.b16 %v623
    %v647 = vunpack.c.l.b16 %v624
    %v648 = vunpack.c.l.b16 %v625
    %v649 = vunpack.c.l.b16 %v626
    %v650 = vunpack.c.l.b16 %v627
    %v651 = vunpack.c.l.b16 %v628
    %v652 = vpack.c.b16 %v645, %v644
    %v653 = vpack.c.b16 %v647, %v646
    %v654 = vpack.c.b16 %v649, %v648
    %v655 = vpack.c.b16 %v651, %v650
    %vm660 = vcmask 523264
    %v662 = vsel %vm660, %v620, 0
    %664 = vmatprep.subr.bf16.mxu0 0
    %665 = vmatpush1.bf16.msra.mxu0 %v652
    %666 = vmatprep.subr.bf16.mxu0 0
    %667 = vmatpush1.bf16.msra.mxu0 %v653
    %668 = vmatprep.subr.bf16.mxu0 0
    %669 = vmatpush1.bf16.msra.mxu0 %v654
    %670 = vmatprep.subr.bf16.mxu0 0
    %671 = vmatpush1.bf16.msra.mxu0 %v655
    %672 = vmatprep.subr.bf16.mxu0 0
    %673 = vmatpush1.bf16.msra.mxu0 0
    %674 = vmatprep.subr.bf16.mxu0 0
    %675 = vmatpush1.bf16.msra.mxu0 0
    %676 = vmatprep.subr.bf16.mxu0 0
    %677 = vmatpush1.bf16.msra.mxu0 0
    %678 = vmatprep.subr.bf16.mxu0 0
    %679 = vmatpush1.bf16.msra.mxu0 0
    %680 = vmatprep.subr.bf16.mxu0 0
    %681 = vmatpush1.bf16.msra.mxu0 0
    %682 = vmatprep.subr.bf16.mxu0 0
    %683 = vmatpush1.bf16.msra.mxu0 0
    %684 = vmatprep.subr.bf16.mxu0 0
    %685 = vmatpush1.bf16.msra.mxu0 0
    %686 = vmatprep.subr.bf16.mxu0 0
    %687 = vmatpush1.bf16.msra.mxu0 0
    %688 = vmatprep.subr.bf16.mxu0 0
    %689 = vmatpush1.bf16.msra.mxu0 0
    %690 = vmatprep.subr.bf16.mxu0 0
    %691 = vmatpush1.bf16.msra.mxu0 0
    %692 = vmatprep.subr.bf16.mxu0 0
    %693 = vmatpush1.bf16.msra.mxu0 0
    %694 = vmatprep.subr.bf16.mxu0 0
    %695 = vmatpush1.bf16.msra.mxu0 0
    %696 = vmatprep.mubr.bf16.mxu0 0
    %697 = vmatmul.mubr.bf16.gmra.mrb[0].mxu0 %v662
    %v698 = vpop.f32.mrb[0].mxu0
    %v699 = vadd.f32 %v634, %v698
    %v700 = vpop.f32.mrb[0].mxu0
    %v701 = vpop.f32.mrb[0].mxu0
    %v702 = vpop.f32.mrb[0].mxu0
    %703 = vdwg.mxu0
    %v704 = vmax.f32 %v699, 0.0
    %v705 = vpack.c.bf16 %v704, %v704
    %v706 = vld [vmem:[%s5] sm:$0xf]
    %v707 = vld [vmem:[%s5 + $0x4] sm:$0xf]
    %v708 = vld [vmem:[%s5 + $0x8] sm:$0xf]
    %v709 = vld [vmem:[%s5 + $0xc] sm:$0xf]
    %v710 = vld [vmem:[%s5 + $0x10] sm:$0xf]
    %v711 = vld [vmem:[%s5 + $0x14] sm:$0xf]
    %v712 = vld [vmem:[%s5 + $0x18] sm:$0xf]
    %v713 = vld [vmem:[%s5 + $0x1c] sm:$0xf]
    %v714 = vld [vmem:[%s6] sm:$0x1]
    %v716 = vlaneseq
    %v717 = vshrl.u32 %v716, 7
    %v718 = vsub.s32 0, %v717
    %v719 = vrot.slane %v714, %v718
    %v729 = vunpack.c.l.b16 %v706
    %v730 = vunpack.c.l.b16 %v707
    %v731 = vunpack.c.l.b16 %v708
    %v732 = vunpack.c.l.b16 %v709
    %v733 = vunpack.c.l.b16 %v710
    %v734 = vunpack.c.l.b16 %v711
    %v735 = vunpack.c.l.b16 %v712
    %v736 = vunpack.c.l.b16 %v713
    %v737 = vpack.c.b16 %v730, %v729
    %v738 = vpack.c.b16 %v732, %v731
    %v739 = vpack.c.b16 %v734, %v733
    %v740 = vpack.c.b16 %v736, %v735
    %v746 = vsel %vm660, %v705, 0
    %748 = vmatprep.subr.bf16.mxu0 0
    %749 = vmatpush1.bf16.msra.mxu0 %v737
    %750 = vmatprep.subr.bf16.mxu0 0
    %751 = vmatpush1.bf16.msra.mxu0 %v738
    %752 = vmatprep.subr.bf16.mxu0 0
    %753 = vmatpush1.bf16.msra.mxu0 %v739
    %754 = vmatprep.subr.bf16.mxu0 0
    %755 = vmatpush1.bf16.msra.mxu0 %v740
    %756 = vmatprep.subr.bf16.mxu0 0
    %757 = vmatpush1.bf16.msra.mxu0 0
    %758 = vmatprep.subr.bf16.mxu0 0
    %759 = vmatpush1.bf16.msra.mxu0 0
    %760 = vmatprep.subr.bf16.mxu0 0
    %761 = vmatpush1.bf16.msra.mxu0 0
    %762 = vmatprep.subr.bf16.mxu0 0
    %763 = vmatpush1.bf16.msra.mxu0 0
    %764 = vmatprep.subr.bf16.mxu0 0
    %765 = vmatpush1.bf16.msra.mxu0 0
    %766 = vmatprep.subr.bf16.mxu0 0
    %767 = vmatpush1.bf16.msra.mxu0 0
    %768 = vmatprep.subr.bf16.mxu0 0
    %769 = vmatpush1.bf16.msra.mxu0 0
    %770 = vmatprep.subr.bf16.mxu0 0
    %771 = vmatpush1.bf16.msra.mxu0 0
    %772 = vmatprep.subr.bf16.mxu0 0
    %773 = vmatpush1.bf16.msra.mxu0 0
    %774 = vmatprep.subr.bf16.mxu0 0
    %775 = vmatpush1.bf16.msra.mxu0 0
    %776 = vmatprep.subr.bf16.mxu0 0
    %777 = vmatpush1.bf16.msra.mxu0 0
    %778 = vmatprep.subr.bf16.mxu0 0
    %779 = vmatpush1.bf16.msra.mxu0 0
    %780 = vmatprep.mubr.bf16.mxu0 0
    %781 = vmatmul.mubr.bf16.gmra.mrb[0].mxu0 %v746
    %v782 = vpop.f32.mrb[0].mxu0
    %v783 = vadd.f32 %v719, %v782
    %v784 = vpop.f32.mrb[0].mxu0
    %v785 = vpop.f32.mrb[0].mxu0
    %v786 = vpop.f32.mrb[0].mxu0
    %787 = vdwg.mxu0
    %788 = vmax.xlane.f32.xlu0 %v783
    %v789 = vpop.xlane.xlu0 %788
    %v790 = vsub.f32 %v783, %v789
    %v791 = vmul.f32 %v790, 1.442695
    %v792 = vpow.pop %v791
    %793 = vadd.xlane.f32.xlu0 %v792
    %v794 = vpop.xlane.xlu0 %793
    %v795 = vlog2.pop %v794
    %v796 = vmul.f32 %v795, 0.6931472
    %v797 = vsub.f32 %v790, %v796
    %798 = vst [vmem:[#allocation2] sm:$0xff] %v797
    // Predicated region
    $region30: #{lit_mnist_forward.1} parent=1 // pred_check
      _
    $region31: #{lit_mnist_forward.1} parent=1 // pred_check_branch
      %800 = sbr.rel (0) target = $region33
    $region32: #{lit_mnist_forward.1} parent=1 // pred_region
      %s802 = ssub.s32 128, 128
      %803 = vsyncadd [#allocation3], %s802
      %s805 = sshll.u32 [#allocation2], 4
      %s806 = int_to_ptr.vmem [resolvable:$true] %s805
      %808 = dma.vmem_to_hbm [thread:$0]  %s806, 128, %s7, [#allocation3]
    $region33: #{lit_mnist_forward.1} parent=1 // pred_fallthru
      _
    // Predicated region
    $region34: #{lit_mnist_forward.1} parent=1 // pred_check
      _
    $region35: #{lit_mnist_forward.1} parent=1 // pred_check_branch
      %810 = sbr.rel (0) target = $region37
    $region36: #{lit_mnist_forward.1} parent=1 // pred_region
      %811 = dma.done [#allocation3], 128
    $region37: #{lit_mnist_forward.1} parent=1 // pred_fallthru
      _
    %812 = vsyncpa [#allocation3], 1

</llo_original>
